<compile_context>
chip_gen: v5e
topology: v5e:2x2
jax: 0.10.0
libtpu: 0.0.40
codegen_flags: <defaults>
</compile_context>

<pallas_src>
import numpy as np
import jax
import jax.numpy as jnp
from jax import lax
from jax.experimental import pallas as pl
from jax.experimental.pallas import tpu as pltpu


# ---------------------------------------------------------------------------
# Block-sparse structure construction (plain Python / numpy "glue")
# ---------------------------------------------------------------------------
def tiled_regular_mask(n_blocks_in: int, n_blocks_out: int, occupancy: int):
    size = min(n_blocks_in, n_blocks_out)
    base = np.zeros((size, size), dtype=bool)
    for i in range(size):
        for t in range(occupancy):
            base[i, (i + t) % size] = True
    mask = np.zeros((n_blocks_in, n_blocks_out), dtype=bool)
    for bi in range(n_blocks_in):
        for bj in range(n_blocks_out):
            mask[bi, bj] = base[bi % size, bj % size]
    return mask


def build_sparse_metadata(mask: np.ndarray):
    """Packed-block ids (row-major over mask) and per-output-column gather lists."""
    n_blocks_in, n_blocks_out = mask.shape
    block_id = -np.ones_like(mask, dtype=np.int32)
    nnz = 0
    for bi in range(n_blocks_in):
        for bj in range(n_blocks_out):
            if mask[bi, bj]:
                block_id[bi, bj] = nnz
                nnz += 1
    nnz_per_col = int(mask[:, 0].sum())
    assert all(int(mask[:, j].sum()) == nnz_per_col for j in range(n_blocks_out)), \
        "tiled-regular mask must have a uniform number of blocks per output column"
    rows = np.zeros((n_blocks_out, nnz_per_col), dtype=np.int32)
    ids = np.zeros((n_blocks_out, nnz_per_col), dtype=np.int32)
    for bj in range(n_blocks_out):
        col_rows = np.nonzero(mask[:, bj])[0]
        rows[bj, :] = col_rows
        ids[bj, :] = block_id[col_rows, bj]
    return nnz, rows, ids


# ---------------------------------------------------------------------------
# Pallas kernel: for each output block bj,
#   y[:, bj] = sum_k  x_blocks[rows[bj, k]] @ W[ids[bj, k]]
# ---------------------------------------------------------------------------
def _bsmm_kernel(rows_ref, ids_ref, xb_ref, w_ref, o_ref):
    # rows_ref, ids_ref : SMEM (n_blocks_out, nnz_per_col) scalar-prefetch tables
    # xb_ref            : VMEM-resident (n_blocks_in, M, bs) bf16
    # w_ref             : VMEM-resident (nnz, bs, bs) bf16
    # o_ref             : (M, cols_per_step * bs) lane-dense output tile
    j = pl.program_id(0)
    nnz_per_col = rows_ref.shape[1]
    M = xb_ref.shape[1]
    bs = w_ref.shape[1]
    cols = o_ref.shape[1] // bs

    for c in range(cols):                       # static, unrolled at trace time
        bj = j * cols + c

        def body(k, acc, bj=bj):
            x_blk = xb_ref[rows_ref[bj, k]]     # (M, bs)  bf16, fed to MXU directly
            w_blk = w_ref[ids_ref[bj, k]]       # (bs, bs) bf16
            return acc + jnp.dot(x_blk, w_blk, preferred_element_type=jnp.float32)

        acc = lax.fori_loop(0, nnz_per_col, body,
                            jnp.zeros((M, bs), jnp.float32), unroll=True)
        o_ref[:, c * bs:(c + 1) * bs] = acc.astype(o_ref.dtype)


def block_sparse_matmul(x, w_data, rows, ids, *, block_size, n_out,
                        max_group_lanes=256):
    """x: (M, n_in), w_data: (nnz, bs, bs) -> (M, n_out)."""
    M, n_in = x.shape
    bs = block_size
    nbi = n_in // bs
    nbo = n_out // bs
    nnz = w_data.shape[0]

    # Group output blocks per grid step for lane-dense (>=128, ideally 256) stores.
    cols_per_step = 1
    for d in range(1, nbo + 1):
        if nbo % d == 0 and d * bs <= max_group_lanes:
            cols_per_step = d
    n_steps = nbo // cols_per_step

    # Present x as (n_blocks_in, M, bs): the in-kernel gather becomes a dynamic
    # index on the leading (untiled) axis — cheap layout plumbing done once.
    xb = jnp.swapaxes(x.reshape(M, nbi, bs), 0, 1)

    flops = 2 * M * bs * bs * nnz
    bytes_accessed = (x.size * x.dtype.itemsize
                      + w_data.size * w_data.dtype.itemsize
                      + M * n_out * x.dtype.itemsize)

    # Explicit VMEM budget (resident x + resident weights + double-buffered out).
    resident = (xb.size * xb.dtype.itemsize
                + w_data.size * w_data.dtype.itemsize
                + 2 * M * cols_per_step * bs * x.dtype.itemsize)
    vmem_limit = int(min(64 * 2**20, max(16 * 2**20, 2 * resident + (2 << 20))))

    grid_spec = pltpu.PrefetchScalarGridSpec(
        num_scalar_prefetch=2,                          # rows, ids land in SMEM
        grid=(n_steps,),
        in_specs=[
            # full x, resident in VMEM (constant block index -> DMA'd once)
            pl.BlockSpec((nbi, M, bs), lambda j, rows, ids: (0, 0, 0)),
            # full packed weights, resident in VMEM
            pl.BlockSpec((nnz, bs, bs), lambda j, rows, ids: (0, 0, 0)),
        ],
        out_specs=pl.BlockSpec((M, cols_per_step * bs),
                               lambda j, rows, ids: (0, j)),
    )

    return pl.pallas_call(
        _bsmm_kernel,
        grid_spec=grid_spec,
        out_shape=jax.ShapeDtypeStruct((M, n_out), x.dtype),
        compiler_params=pltpu.CompilerParams(
            dimension_semantics=("parallel",),
            vmem_limit_bytes=vmem_limit),
        cost_estimate=pl.CostEstimate(flops=flops, transcendentals=0,
                                      bytes_accessed=bytes_accessed),
    )(rows, ids, xb, w_data)


# ---------------------------------------------------------------------------
# SparseLinear module equivalent (forward only)
# ---------------------------------------------------------------------------
class SparseLinearPallas:
    def __init__(self, n_in, n_out, block_size, occupancy, key,
                 dtype=jnp.bfloat16):
        assert n_in % block_size == 0
        assert n_out % block_size == 0
        self.n_in, self.n_out = n_in, n_out
        self.block_size = block_size
        self.occupancy = occupancy
        self.dtype = dtype

        nbi, nbo = n_in // block_size, n_out // block_size
        mask = tiled_regular_mask(nbi, nbo, occupancy)
        nnz, rows, ids = build_sparse_metadata(mask)
        self.mask = mask
        self.rows = jnp.asarray(rows, dtype=jnp.int32)
        self.ids = jnp.asarray(ids, dtype=jnp.int32)

        # _init_weights: normal(0, std) with glorot-style std on effective fans
        fan_in = n_in * (occupancy / nbi)
        fan_out = n_out * (occupancy / nbo)
        std = (2.0 / (fan_in + fan_out)) ** 0.5
        self.weight = (jax.random.normal(key, (nnz, block_size, block_size),
                                         dtype=jnp.float32) * std).astype(dtype)

    def dense_weight(self):
        bs = self.block_size
        W = np.zeros((self.n_in, self.n_out), dtype=np.float32)
        w = np.asarray(self.weight, dtype=np.float32)
        b = 0
        nbi, nbo = self.mask.shape
        for bi in range(nbi):
            for bj in range(nbo):
                if self.mask[bi, bj]:
                    W[bi * bs:(bi + 1) * bs, bj * bs:(bj + 1) * bs] = w[b]
                    b += 1
        return W

    def __call__(self, x):
        return block_sparse_matmul(x, self.weight, self.rows, self.ids,
                                   block_size=self.block_size, n_out=self.n_out)


if __name__ == "__main__":
    key = jax.random.PRNGKey(0)
    k_w, k_x = jax.random.split(key)

    # Small but TPU-tile-friendly sizes: n_in=512, n_out=512, block_size=128,
    # occupancy=2  ->  4x4 block mask with 2 nonzero blocks per row/column.
    batch, n_in, n_out, block_size, occupancy = 16, 512, 512, 128, 2

    layer = SparseLinearPallas(n_in, n_out, block_size, occupancy, k_w,
                               dtype=jnp.bfloat16)
    x = jax.random.normal(k_x, (batch, n_in), dtype=jnp.float32).astype(jnp.bfloat16)

    y = jax.block_until_ready(layer(x))

    # Reference: dense matmul against the densified block-sparse weight
    # (using the same bf16-quantized values, accumulated in f32).
    W = layer.dense_weight()
    x_f32 = np.asarray(x, dtype=np.float32)
    y_ref = x_f32 @ W
    np.testing.assert_allclose(np.asarray(y, dtype=np.float32), y_ref,
                               rtol=2e-2, atol=2e-2)
    assert y.shape == (batch, n_out) and y.dtype == jnp.bfloat16
    print("KERNEL_OK")
</pallas_src>

<mosaic_0001>
module attributes {stable_mosaic.version = 11 : i64} {
  func.func @_bsmm_kernel(%arg0: i32, %arg1: memref<4x2xi32, #tpu.memory_space<smem>>, %arg2: memref<4x2xi32, #tpu.memory_space<smem>>, %arg3: memref<4x16x128xbf16, #tpu.memory_space<vmem>>, %arg4: memref<8x128x128xbf16, #tpu.memory_space<vmem>>, %arg5: memref<16x256xbf16, #tpu.memory_space<vmem>>) attributes {dimension_semantics = [#tpu.dimension_semantics<parallel>], iteration_bounds = array<i64: 2>, scalar_prefetch = 2 : i64, scratch_operands = 0 : i64, tpu.core_type = #tpu.core_type<tc>, window_params = [{pipeline_mode = #tpu.pipeline_mode<synchronous>, transform_indices = @transform_0, window_bounds = array<i64: 4, 16, 128>}, {pipeline_mode = #tpu.pipeline_mode<synchronous>, transform_indices = @transform_1, window_bounds = array<i64: 8, 128, 128>}, {transform_indices = @transform_2, window_bounds = array<i64: 16, 256>}]} {
    %c2_i32 = arith.constant 2 : i32
    %0 = arith.muli %arg0, %c2_i32 : i32
    %c0_i32 = arith.constant 0 : i32
    %1 = arith.addi %0, %c0_i32 : i32
    %cst = arith.constant 0.000000e+00 : f32
    %2 = vector.broadcast %cst : f32 to vector<16x128xf32>
    %c0_i32_0 = arith.constant 0 : i32
    %3 = arith.index_cast %1 : i32 to index
    %4 = arith.index_cast %c0_i32_0 : i32 to index
    %5 = memref.load %arg1[%3, %4] : memref<4x2xi32, #tpu.memory_space<smem>>
    %6 = arith.index_cast %5 : i32 to index
    %c0 = arith.constant 0 : index
    %c0_1 = arith.constant 0 : index
    %7 = vector.load %arg3[%6, %c0, %c0_1] : memref<4x16x128xbf16, #tpu.memory_space<vmem>>, vector<1x16x128xbf16>
    %8 = vector.shape_cast %7 : vector<1x16x128xbf16> to vector<16x128xbf16>
    %9 = arith.index_cast %1 : i32 to index
    %10 = arith.index_cast %c0_i32_0 : i32 to index
    %11 = memref.load %arg2[%9, %10] : memref<4x2xi32, #tpu.memory_space<smem>>
    %12 = arith.index_cast %11 : i32 to index
    %c0_2 = arith.constant 0 : index
    %c0_3 = arith.constant 0 : index
    %13 = vector.load %arg4[%12, %c0_2, %c0_3] : memref<8x128x128xbf16, #tpu.memory_space<vmem>>, vector<1x128x128xbf16>
    %14 = vector.shape_cast %13 : vector<1x128x128xbf16> to vector<128x128xbf16>
    %cst_4 = arith.constant dense<0.000000e+00> : vector<16x128xf32>
    %15 = tpu.matmul %8, %14, %cst_4 {dimension_numbers = #tpu.dot_dimension_numbers<[1], [0], [0], [1], [0, 0, 1, 1], [], []>} : vector<16x128xbf16>, vector<128x128xbf16>, vector<16x128xf32> -> vector<16x128xf32>
    %16 = arith.addf %2, %15 : vector<16x128xf32>
    %c1_i32 = arith.constant 1 : i32
    %17 = arith.index_cast %1 : i32 to index
    %18 = arith.index_cast %c1_i32 : i32 to index
    %19 = memref.load %arg1[%17, %18] : memref<4x2xi32, #tpu.memory_space<smem>>
    %20 = arith.index_cast %19 : i32 to index
    %c0_5 = arith.constant 0 : index
    %c0_6 = arith.constant 0 : index
    %21 = vector.load %arg3[%20, %c0_5, %c0_6] : memref<4x16x128xbf16, #tpu.memory_space<vmem>>, vector<1x16x128xbf16>
    %22 = vector.shape_cast %21 : vector<1x16x128xbf16> to vector<16x128xbf16>
    %23 = arith.index_cast %1 : i32 to index
    %24 = arith.index_cast %c1_i32 : i32 to index
    %25 = memref.load %arg2[%23, %24] : memref<4x2xi32, #tpu.memory_space<smem>>
    %26 = arith.index_cast %25 : i32 to index
    %c0_7 = arith.constant 0 : index
    %c0_8 = arith.constant 0 : index
    %27 = vector.load %arg4[%26, %c0_7, %c0_8] : memref<8x128x128xbf16, #tpu.memory_space<vmem>>, vector<1x128x128xbf16>
    %28 = vector.shape_cast %27 : vector<1x128x128xbf16> to vector<128x128xbf16>
    %cst_9 = arith.constant dense<0.000000e+00> : vector<16x128xf32>
    %29 = tpu.matmul %22, %28, %cst_9 {dimension_numbers = #tpu.dot_dimension_numbers<[1], [0], [0], [1], [0, 0, 1, 1], [], []>} : vector<16x128xbf16>, vector<128x128xbf16>, vector<16x128xf32> -> vector<16x128xf32>
    %30 = arith.addf %16, %29 : vector<16x128xf32>
    %c2_i32_10 = arith.constant 2 : i32
    %31 = arith.truncf %30 : vector<16x128xf32> to vector<16x128xbf16>
    %c0_11 = arith.constant 0 : index
    %c0_12 = arith.constant 0 : index
    %32 = vector.load %arg5[%c0_11, %c0_12] : memref<16x256xbf16, #tpu.memory_space<vmem>>, vector<16x128xbf16>
    tpu.vector_store %arg5[%c0_11, %c0_12], %31 {strides = array<i32>} : memref<16x256xbf16, #tpu.memory_space<vmem>>, vector<16x128xbf16>,
    %c2_i32_13 = arith.constant 2 : i32
    %33 = arith.muli %arg0, %c2_i32_13 : i32
    %c1_i32_14 = arith.constant 1 : i32
    %34 = arith.addi %33, %c1_i32_14 : i32
    %cst_15 = arith.constant 0.000000e+00 : f32
    %35 = vector.broadcast %cst_15 : f32 to vector<16x128xf32>
    %c0_i32_16 = arith.constant 0 : i32
    %36 = arith.index_cast %34 : i32 to index
    %37 = arith.index_cast %c0_i32_16 : i32 to index
    %38 = memref.load %arg1[%36, %37] : memref<4x2xi32, #tpu.memory_space<smem>>
    %39 = arith.index_cast %38 : i32 to index
    %c0_17 = arith.constant 0 : index
    %c0_18 = arith.constant 0 : index
    %40 = vector.load %arg3[%39, %c0_17, %c0_18] : memref<4x16x128xbf16, #tpu.memory_space<vmem>>, vector<1x16x128xbf16>
    %41 = vector.shape_cast %40 : vector<1x16x128xbf16> to vector<16x128xbf16>
    %42 = arith.index_cast %34 : i32 to index
    %43 = arith.index_cast %c0_i32_16 : i32 to index
    %44 = memref.load %arg2[%42, %43] : memref<4x2xi32, #tpu.memory_space<smem>>
    %45 = arith.index_cast %44 : i32 to index
    %c0_19 = arith.constant 0 : index
    %c0_20 = arith.constant 0 : index
    %46 = vector.load %arg4[%45, %c0_19, %c0_20] : memref<8x128x128xbf16, #tpu.memory_space<vmem>>, vector<1x128x128xbf16>
    %47 = vector.shape_cast %46 : vector<1x128x128xbf16> to vector<128x128xbf16>
    %cst_21 = arith.constant dense<0.000000e+00> : vector<16x128xf32>
    %48 = tpu.matmul %41, %47, %cst_21 {dimension_numbers = #tpu.dot_dimension_numbers<[1], [0], [0], [1], [0, 0, 1, 1], [], []>} : vector<16x128xbf16>, vector<128x128xbf16>, vector<16x128xf32> -> vector<16x128xf32>
    %49 = arith.addf %35, %48 : vector<16x128xf32>
    %c1_i32_22 = arith.constant 1 : i32
    %50 = arith.index_cast %34 : i32 to index
    %51 = arith.index_cast %c1_i32_22 : i32 to index
    %52 = memref.load %arg1[%50, %51] : memref<4x2xi32, #tpu.memory_space<smem>>
    %53 = arith.index_cast %52 : i32 to index
    %c0_23 = arith.constant 0 : index
    %c0_24 = arith.constant 0 : index
    %54 = vector.load %arg3[%53, %c0_23, %c0_24] : memref<4x16x128xbf16, #tpu.memory_space<vmem>>, vector<1x16x128xbf16>
    %55 = vector.shape_cast %54 : vector<1x16x128xbf16> to vector<16x128xbf16>
    %56 = arith.index_cast %34 : i32 to index
    %57 = arith.index_cast %c1_i32_22 : i32 to index
    %58 = memref.load %arg2[%56, %57] : memref<4x2xi32, #tpu.memory_space<smem>>
    %59 = arith.index_cast %58 : i32 to index
    %c0_25 = arith.constant 0 : index
    %c0_26 = arith.constant 0 : index
    %60 = vector.load %arg4[%59, %c0_25, %c0_26] : memref<8x128x128xbf16, #tpu.memory_space<vmem>>, vector<1x128x128xbf16>
    %61 = vector.shape_cast %60 : vector<1x128x128xbf16> to vector<128x128xbf16>
    %cst_27 = arith.constant dense<0.000000e+00> : vector<16x128xf32>
    %62 = tpu.matmul %55, %61, %cst_27 {dimension_numbers = #tpu.dot_dimension_numbers<[1], [0], [0], [1], [0, 0, 1, 1], [], []>} : vector<16x128xbf16>, vector<128x128xbf16>, vector<16x128xf32> -> vector<16x128xf32>
    %63 = arith.addf %49, %62 : vector<16x128xf32>
    %c2_i32_28 = arith.constant 2 : i32
    %64 = arith.truncf %63 : vector<16x128xf32> to vector<16x128xbf16>
    %c0_29 = arith.constant 0 : index
    %c128 = arith.constant 128 : index
    %65 = vector.load %arg5[%c0_29, %c128] : memref<16x256xbf16, #tpu.memory_space<vmem>>, vector<16x128xbf16>
    tpu.vector_store %arg5[%c0_29, %c128], %64 {strides = array<i32>} : memref<16x256xbf16, #tpu.memory_space<vmem>>, vector<16x128xbf16>,
    return
  }
  func.func @transform_0(%arg0: i32, %arg1: memref<4x2xi32, #tpu.memory_space<smem>>, %arg2: memref<4x2xi32, #tpu.memory_space<smem>>) -> (i32, i32, i32) {
    %c0_i32 = arith.constant 0 : i32
    %c0_i32_0 = arith.constant 0 : i32
    %c0_i32_1 = arith.constant 0 : i32
    %c0_i32_2 = arith.constant 0 : i32
    return %c0_i32, %c0_i32_0, %c0_i32_1 : i32, i32, i32
  }
  func.func @transform_1(%arg0: i32, %arg1: memref<4x2xi32, #tpu.memory_space<smem>>, %arg2: memref<4x2xi32, #tpu.memory_space<smem>>) -> (i32, i32, i32) {
    %c0_i32 = arith.constant 0 : i32
    %c0_i32_0 = arith.constant 0 : i32
    %c0_i32_1 = arith.constant 0 : i32
    %c0_i32_2 = arith.constant 0 : i32
    return %c0_i32, %c0_i32_0, %c0_i32_1 : i32, i32, i32
  }
  func.func @transform_2(%arg0: i32, %arg1: memref<4x2xi32, #tpu.memory_space<smem>>, %arg2: memref<4x2xi32, #tpu.memory_space<smem>>) -> (i32, i32) {
    %c0_i32 = arith.constant 0 : i32
    %c0_i32_0 = arith.constant 0 : i32
    return %c0_i32, %arg0 : i32, i32
  }
}

</mosaic_0001>

<llo_original>
// kernel: tpu_custom_call.1
$region0: #{tpu_custom_call.1}
  #allocation0 [shape = 'u32[]', space=smem, size = 0x4, offset = 0x4, fixed_abs, tag = 'smem constant byte address 0x4 - core index']
  #allocation1 [shape = 'u32[72,128]{1,0:T(1,128)}', space=vmem, size = 0x9000, scoped, tag = 'internal scratch']
  #allocation2 [shape = 's32[1]{0}', space=sflag, size = 0x4, scoped, tag = 'scoped memory for tpu_custom_call.1']
  #allocation3 [shape = 'u8[2048]{0}', space=smem, size = 0x800, scoped, tag = 'prefetched SMEM operand 0']
  #allocation4 [shape = 'u8[2048]{0}', space=smem, size = 0x800, scoped, tag = 'prefetched SMEM operand 1']
  %s0 = inlined_call_operand.vmem [shape: s32[4,2], index: 0, kind: input, shape index: {}]
  %s1 = inlined_call_operand.vmem [shape: s32[4,2], index: 1, kind: input, shape index: {}]
  %s2 = inlined_call_operand.hbm [shape: bf16[4,16,128], index: 2, kind: input, shape index: {}]
  %s3 = inlined_call_operand.hbm [shape: bf16[8,128,128], index: 3, kind: input, shape index: {}]
  %s4 = inlined_call_operand.hbm [shape: bf16[16,512], index: 4, kind: output, shape index: {}]
  %s5 = sld [smem:[#allocation0]]
  $region49: #{tpu_custom_call.1} parent=0
    _
  %s7 = ssub.s32 1, %s5
  %s8 = scalar_select 0, %s7, %s5
  %s10 = sshll.u32 %s0, 4
  %s11 = int_to_ptr.vmem [resolvable:$true] %s10
  %13 = dma.vmem_to_smem %s11, 64, [#allocation3], [#allocation2]
  %s15 = sshll.u32 %s1, 4
  %s16 = int_to_ptr.vmem [resolvable:$true] %s15
  %18 = dma.vmem_to_smem %s16, 64, [#allocation4], [#allocation2]
  %20 = dma.done [#allocation2], 128
  %21 = sfence
  $region1: #{tpu_custom_call.1} parent=0
    #allocation5 [shape = 'u8[16384]{0}', space=vmem, size = 0x4000, scoped, tag = 'input window, operand 2, single buffered']
    #allocation6 [shape = 's32[2]{0}', space=sflag, size = 0x8, scoped, tag = 'scoped memory for tpu_custom_call.1']
    #allocation7 [shape = 's32[2]{0}', space=sflag, size = 0x8, scoped, tag = 'scoped memory for tpu_custom_call.1']
    #allocation8 [shape = 'u8[262144]{0}', space=vmem, size = 0x40000, scoped, tag = 'input window, operand 3, single buffered']
    #allocation9 [shape = 's32[1]{0}', space=sflag, size = 0x4, scoped, tag = 'scoped memory for tpu_custom_call.1']
    #allocation10 [shape = 'u8[16384]{0}', space=vmem, size = 0x4000, scoped, tag = 'output window, operand 0']
    %22 = vsyncpa [#allocation6], 0
    %23 = vsyncpa [#allocation9], 0
    %24 = vsyncpa [#allocation7], 0
    %s25 = scalar_lea.sflag [#allocation7], 1
    %26 = vsyncpa %s25, 0
    loop: start=0, step=1, limit=4
    $region2: #{tpu_custom_call.1} parent=1 // loop_pre_header
      _
    $region3: #{tpu_custom_call.1} parent=1 // loop_header
      %s28 = sphi 0, %s32
      %p29 = scmp.ge.s32.totalorder %s28, 4
      %s36 = sphi 0, %s36
      %s38 = sphi 0, %s36
      %s39 = sphi 0, %s38
      %s53 = sphi 0, %s39
      %s57 = sphi 0, %s57
      %s59 = sphi 0, %s57
      %s60 = sphi 0, %s59
      %s74 = sphi 0, %s60
      %s80 = sphi 0, %s82
      %s83 = sphi 0, %s80
      %s84 = sphi 0, %s83
      %s100 = sphi 0, %s84
    $region4: #{tpu_custom_call.1} parent=1 // loop_header_branch
      %31 = sbr.rel (%p29) target = $region8
    $region5: #{tpu_custom_call.1} parent=1 // loop_body
      %s33 = ssub.s32 %s28, 1
      %s34 = ssub.s32 %s28, 2
      %s35 = sadd.s32 %s28, 1
      %s37 = sadd.s32 %s36, 1
      %p40 = scmp.eq.s32.totalorder %s28, 1
      %p41 = scmp.ne.s32.totalorder %s36, %s38
      %p42 = scmp.eq.s32.totalorder %s28, 0
      %p43 = por %p41, %p42
      %p44 = scmp.ne.s32.totalorder %s36, %s38
      %p45 = scmp.eq.s32.totalorder %s33, 1
      %p46 = por %p44, %p45
      %p47 = scmp.ne.s32.totalorder %s38, %s39
      %p48 = scmp.eq.s32.totalorder %s33, 0
      %p49 = por %p47, %p48
      %p50 = scmp.ne.s32.totalorder %s38, %s39
      %p51 = scmp.eq.s32.totalorder %s34, 1
      %p52 = por %p50, %p51
      %p54 = scmp.ne.s32.totalorder %s39, %s53
      %p55 = scmp.eq.s32.totalorder %s34, 0
      %p56 = por %p54, %p55
      %s58 = sadd.s32 %s57, 1
      %p61 = scmp.eq.s32.totalorder %s28, 1
      %p62 = scmp.ne.s32.totalorder %s57, %s59
      %p63 = scmp.eq.s32.totalorder %s28, 0
      %p64 = por %p62, %p63
      %p65 = scmp.ne.s32.totalorder %s57, %s59
      %p66 = scmp.eq.s32.totalorder %s33, 1
      %p67 = por %p65, %p66
      %p68 = scmp.ne.s32.totalorder %s59, %s60
      %p69 = scmp.eq.s32.totalorder %s33, 0
      %p70 = por %p68, %p69
      %p71 = scmp.ne.s32.totalorder %s59, %s60
      %p72 = scmp.eq.s32.totalorder %s34, 1
      %p73 = por %p71, %p72
      %p75 = scmp.ne.s32.totalorder %s60, %s74
      %p76 = scmp.eq.s32.totalorder %s34, 0
      %p77 = por %p75, %p76
      %s78 = ssub.s32 %s28, %s35
      %p79 = scmp.eq.s32.totalorder %s78, 0
      %s81 = sadd.s32 %s80, 1
      %s82 = scalar_select %p79, %s80, %s81
      %p85 = pneg %p79
      %p86 = scmp.eq.s32.totalorder %s28, 1
      %p87 = por %p85, %p86
      %p88 = scmp.ne.s32.totalorder %s80, %s83
      %p89 = scmp.eq.s32.totalorder %s28, 0
      %p90 = por %p88, %p89
      %p91 = scmp.ne.s32.totalorder %s80, %s83
      %p92 = scmp.eq.s32.totalorder %s33, 1
      %p93 = por %p91, %p92
      %p94 = scmp.ne.s32.totalorder %s83, %s84
      %p95 = scmp.eq.s32.totalorder %s33, 0
      %p96 = por %p94, %p95
      %p97 = scmp.ne.s32.totalorder %s83, %s84
      %p98 = scmp.eq.s32.totalorder %s34, 1
      %p99 = por %p97, %p98
      %p101 = scmp.ne.s32.totalorder %s84, %s100
      %p102 = scmp.eq.s32.totalorder %s34, 0
      %p103 = por %p101, %p102
      %p104 = scmp.le.s32.totalorder 1, %s28
      %p105 = scmp.lt.s32.totalorder %s28, 3
      %p106 = pnand %p104, %p105
      %p107 = pneg %p106
      // Predicated region
      $region9: #{tpu_custom_call.1} parent=5 // pred_check
        _
      $region10: #{tpu_custom_call.1} parent=5 // pred_check_branch
        %109 = sbr.rel (%p106) target = $region12
      $region11: #{tpu_custom_call.1} parent=5 // pred_region
        %s110 = ssub.s32 %s28, 1
        // Predicated region
        $region13: #{tpu_custom_call.1} parent=11 // pred_check
          %p111 = pneg %p49
        $region14: #{tpu_custom_call.1} parent=11 // pred_check_branch
          %113 = sbr.rel (%p111) target = $region16
        $region15: #{tpu_custom_call.1} parent=11 // pred_region
          %115 = vsyncadd [#allocation6], 0
          %s116 = sshll.u32 %s2, 4
          %s117 = int_to_ptr.hbm [resolvable:$true] %s116
          %s118 = sshll.u32 [#allocation5], 4
          %s119 = int_to_ptr.vmem [resolvable:$true] %s118
          %124 = dma.hbm_to_vmem [thread:$0]  %s117, 512, %s119, [#allocation6], 64, 64, 4
        $region16: #{tpu_custom_call.1} parent=11 // pred_fallthru
          _
        // Predicated region
        $region17: #{tpu_custom_call.1} parent=11 // pred_check
          %p125 = pneg %p70
        $region18: #{tpu_custom_call.1} parent=11 // pred_check_branch
          %127 = sbr.rel (%p125) target = $region20
        $region19: #{tpu_custom_call.1} parent=11 // pred_region
          %129 = vsyncadd [#allocation9], 0
          %s130 = sshll.u32 %s3, 4
          %s131 = int_to_ptr.hbm [resolvable:$true] %s130
          %s132 = sshll.u32 [#allocation8], 4
          %s133 = int_to_ptr.vmem [resolvable:$true] %s132
          %138 = dma.hbm_to_vmem [thread:$0]  %s131, 8192, %s133, [#allocation9], 64, 64, 4
        $region20: #{tpu_custom_call.1} parent=11 // pred_fallthru
          _
      $region12: #{tpu_custom_call.1} parent=5 // pred_fallthru
        _
      %p139 = scmp.lt.s32.totalorder %s28, 2
      // Predicated region
      $region21: #{tpu_custom_call.1} parent=5 // pred_check
        %p140 = pneg %p139
      $region22: #{tpu_custom_call.1} parent=5 // pred_check_branch
        %142 = sbr.rel (%p140) target = $region24
      $region23: #{tpu_custom_call.1} parent=5 // pred_region
        _
      $region24: #{tpu_custom_call.1} parent=5 // pred_fallthru
        _
      %p143 = scmp.le.s32.totalorder 1, %s28
      %p144 = scmp.lt.s32.totalorder %s28, 3
      %p145 = pnand %p143, %p144
      %p146 = pneg %p145
      // Predicated region
      $region25: #{tpu_custom_call.1} parent=5 // pred_check
        _
      $region26: #{tpu_custom_call.1} parent=5 // pred_check_branch
        %148 = sbr.rel (%p145) target = $region28
      $region27: #{tpu_custom_call.1} parent=5 // pred_region
        %s149 = ssub.s32 %s28, 1
        // Predicated region
        $region29: #{tpu_custom_call.1} parent=27 // pred_check
          %p150 = pneg %p49
        $region30: #{tpu_custom_call.1} parent=27 // pred_check_branch
          %152 = sbr.rel (%p150) target = $region32
        $region31: #{tpu_custom_call.1} parent=27 // pred_region
          %154 = dma.done [#allocation6], 512
        $region32: #{tpu_custom_call.1} parent=27 // pred_fallthru
          _
        // Predicated region
        $region33: #{tpu_custom_call.1} parent=27 // pred_check
          %p155 = pneg %p70
        $region34: #{tpu_custom_call.1} parent=27 // pred_check_branch
          %157 = sbr.rel (%p155) target = $region36
        $region35: #{tpu_custom_call.1} parent=27 // pred_region
          %159 = dma.done [#allocation9], 8192
        $region36: #{tpu_custom_call.1} parent=27 // pred_fallthru
          _
        %p160 = pneg %p49
        %p161 = pneg %p46
        %p162 = pneg %p70
        %p163 = pneg %p67
        %p164 = pneg %p96
        %p165 = pneg %p93
        %s166 = sand.u32 %s83, 1
        %s167 = scalar_lea.sflag [#allocation7], %s166
        %s168 = sand.u32 %s83, 1
        %s169 = smul.addr %s168, 16
        %s170 = scalar_lea.vmem [#allocation10], %s169
        %s171 = smul.u32 2, %s33
        %s172 = smul.u32 %s33, 2
        %s173 = smul.u32 %s172, 128
        %s174 = sld [smem:[#allocation3 + %s173]]
        %s175 = smul.u32 %s174, 2
        %s176 = smul.addr %s175, 4
        %s177 = scalar_lea.vmem [#allocation5], %s176
        %v178 = vld [vmem:[%s177] sm:$0xf]
        %v179 = vld [vmem:[%s177 + $0x4] sm:$0xf]
        %s180 = sld [smem:[#allocation4 + %s173]]
        %s181 = smul.u32 %s180, 16
        %s182 = smul.addr %s181, 4
        %s183 = scalar_lea.vmem [#allocation8], %s182
        %v184 = vld [vmem:[%s183] sm:$0xf]
        %v185 = vld [vmem:[%s183 + $0x4] sm:$0xf]
        %v186 = vld [vmem:[%s183 + $0x8] sm:$0xf]
        %v187 = vld [vmem:[%s183 + $0xc] sm:$0xf]
        %v188 = vld [vmem:[%s183 + $0x10] sm:$0xf]
        %v189 = vld [vmem:[%s183 + $0x14] sm:$0xf]
        %v190 = vld [vmem:[%s183 + $0x18] sm:$0xf]
        %v191 = vld [vmem:[%s183 + $0x1c] sm:$0xf]
        %v192 = vld [vmem:[%s183 + $0x20] sm:$0xf]
        %v193 = vld [vmem:[%s183 + $0x24] sm:$0xf]
        %v194 = vld [vmem:[%s183 + $0x28] sm:$0xf]
        %v195 = vld [vmem:[%s183 + $0x2c] sm:$0xf]
        %v196 = vld [vmem:[%s183 + $0x30] sm:$0xf]
        %v197 = vld [vmem:[%s183 + $0x34] sm:$0xf]
        %v198 = vld [vmem:[%s183 + $0x38] sm:$0xf]
        %v199 = vld [vmem:[%s183 + $0x3c] sm:$0xf]
        %s200 = sadd.s32 %s173, 1
        %s201 = sld [smem:[#allocation3 + %s200]]
        %s202 = smul.u32 %s201, 2
        %s203 = smul.addr %s202, 4
        %s204 = scalar_lea.vmem [#allocation5], %s203
        %v205 = vld [vmem:[%s204] sm:$0xf]
        %v206 = vld [vmem:[%s204 + $0x4] sm:$0xf]
        %s207 = sld [smem:[#allocation4 + %s200]]
        %s208 = smul.u32 %s207, 16
        %s209 = smul.addr %s208, 4
        %s210 = scalar_lea.vmem [#allocation8], %s209
        %v211 = vld [vmem:[%s210] sm:$0xf]
        %v212 = vld [vmem:[%s210 + $0x4] sm:$0xf]
        %v213 = vld [vmem:[%s210 + $0x8] sm:$0xf]
        %v214 = vld [vmem:[%s210 + $0xc] sm:$0xf]
        %v215 = vld [vmem:[%s210 + $0x10] sm:$0xf]
        %v216 = vld [vmem:[%s210 + $0x14] sm:$0xf]
        %v217 = vld [vmem:[%s210 + $0x18] sm:$0xf]
        %v218 = vld [vmem:[%s210 + $0x1c] sm:$0xf]
        %v219 = vld [vmem:[%s210 + $0x20] sm:$0xf]
        %v220 = vld [vmem:[%s210 + $0x24] sm:$0xf]
        %v221 = vld [vmem:[%s210 + $0x28] sm:$0xf]
        %v222 = vld [vmem:[%s210 + $0x2c] sm:$0xf]
        %v223 = vld [vmem:[%s210 + $0x30] sm:$0xf]
        %v224 = vld [vmem:[%s210 + $0x34] sm:$0xf]
        %v225 = vld [vmem:[%s210 + $0x38] sm:$0xf]
        %v226 = vld [vmem:[%s210 + $0x3c] sm:$0xf]
        %v229 = vunpack.c.l.b16 %v205
        %v230 = vunpack.c.l.b16 %v206
        %v231 = vpack.c.b16 %v230, %v229
        %v249 = vunpack.c.l.b16 %v211
        %v250 = vunpack.c.l.b16 %v212
        %v251 = vunpack.c.l.b16 %v213
        %v252 = vunpack.c.l.b16 %v214
        %v253 = vunpack.c.l.b16 %v215
        %v254 = vunpack.c.l.b16 %v216
        %v255 = vunpack.c.l.b16 %v217
        %v256 = vunpack.c.l.b16 %v218
        %v257 = vunpack.c.l.b16 %v219
        %v258 = vunpack.c.l.b16 %v220
        %v259 = vunpack.c.l.b16 %v221
        %v260 = vunpack.c.l.b16 %v222
        %v261 = vunpack.c.l.b16 %v223
        %v262 = vunpack.c.l.b16 %v224
        %v263 = vunpack.c.l.b16 %v225
        %v264 = vunpack.c.l.b16 %v226
        %v265 = vpack.c.b16 %v250, %v249
        %v266 = vpack.c.b16 %v252, %v251
        %v267 = vpack.c.b16 %v254, %v253
        %v268 = vpack.c.b16 %v256, %v255
        %v269 = vpack.c.b16 %v258, %v257
        %v270 = vpack.c.b16 %v260, %v259
        %v271 = vpack.c.b16 %v262, %v261
        %v272 = vpack.c.b16 %v264, %v263
        %281 = vmatpush.bf16.msra.mxu0 %v272
        %282 = vmatpush.bf16.msra.mxu0 %v271
        %283 = vmatpush.bf16.msra.mxu0 %v270
        %284 = vmatpush.bf16.msra.mxu0 %v269
        %285 = vmatpush.bf16.msra.mxu0 %v268
        %286 = vmatpush.bf16.msra.mxu0 %v267
        %287 = vmatpush.bf16.msra.mxu0 %v266
        %288 = vmatpush.bf16.msra.mxu0 %v265
        %289 = vmatmul.bf16.gmra.mxu0 %v231
        %v290 = vpop.f32.mrf.mxu0
        %v291 = vadd.f32 0.0, %v290
        %v292 = vpop.f32.mrf.mxu0
        %v293 = vadd.f32 0.0, %v292
        %294 = vdwg.mxu0
        %v297 = vunpack.c.l.b16 %v178
        %v298 = vunpack.c.l.b16 %v179
        %v299 = vpack.c.b16 %v298, %v297
        %v317 = vunpack.c.l.b16 %v184
        %v318 = vunpack.c.l.b16 %v185
        %v319 = vunpack.c.l.b16 %v186
        %v320 = vunpack.c.l.b16 %v187
        %v321 = vunpack.c.l.b16 %v188
        %v322 = vunpack.c.l.b16 %v189
        %v323 = vunpack.c.l.b16 %v190
        %v324 = vunpack.c.l.b16 %v191
        %v325 = vunpack.c.l.b16 %v192
        %v326 = vunpack.c.l.b16 %v193
        %v327 = vunpack.c.l.b16 %v194
        %v328 = vunpack.c.l.b16 %v195
        %v329 = vunpack.c.l.b16 %v196
        %v330 = vunpack.c.l.b16 %v197
        %v331 = vunpack.c.l.b16 %v198
        %v332 = vunpack.c.l.b16 %v199
        %v333 = vpack.c.b16 %v318, %v317
        %v334 = vpack.c.b16 %v320, %v319
        %v335 = vpack.c.b16 %v322, %v321
        %v336 = vpack.c.b16 %v324, %v323
        %v337 = vpack.c.b16 %v326, %v325
        %v338 = vpack.c.b16 %v328, %v327
        %v339 = vpack.c.b16 %v330, %v329
        %v340 = vpack.c.b16 %v332, %v331
        %349 = vmatpush.bf16.msra.mxu0 %v340
        %350 = vmatpush.bf16.msra.mxu0 %v339
        %351 = vmatpush.bf16.msra.mxu0 %v338
        %352 = vmatpush.bf16.msra.mxu0 %v337
        %353 = vmatpush.bf16.msra.mxu0 %v336
        %354 = vmatpush.bf16.msra.mxu0 %v335
        %355 = vmatpush.bf16.msra.mxu0 %v334
        %356 = vmatpush.bf16.msra.mxu0 %v333
        %357 = vmatmul.bf16.gmra.mxu0 %v299
        %v358 = vpop.f32.mrf.mxu0
        %v359 = vadd.f32 %v291, %v358
        %v360 = vpop.f32.mrf.mxu0
        %v361 = vadd.f32 %v293, %v360
        %362 = vdwg.mxu0
        %v363 = vpack.c.bf16 %v359, %v359
        %v364 = vpack.c.bf16 %v361, %v361
        %365 = vst [vmem:[%s170] sm:$0xf] %v363
        %366 = vst [vmem:[%s170 + $0x8] sm:$0xf] %v364
        %s367 = sadd.s32 %s172, 1
        %s368 = smul.u32 %s367, 128
        %s369 = sld [smem:[#allocation3 + %s368]]
        %s370 = smul.u32 %s369, 2
        %s371 = smul.addr %s370, 4
        %s372 = scalar_lea.vmem [#allocation5], %s371
        %v373 = vld [vmem:[%s372] sm:$0xf]
        %v374 = vld [vmem:[%s372 + $0x4] sm:$0xf]
        %s375 = sld [smem:[#allocation4 + %s368]]
        %s376 = smul.u32 %s375, 16
        %s377 = smul.addr %s376, 4
        %s378 = scalar_lea.vmem [#allocation8], %s377
        %v379 = vld [vmem:[%s378] sm:$0xf]
        %v380 = vld [vmem:[%s378 + $0x4] sm:$0xf]
        %v381 = vld [vmem:[%s378 + $0x8] sm:$0xf]
        %v382 = vld [vmem:[%s378 + $0xc] sm:$0xf]
        %v383 = vld [vmem:[%s378 + $0x10] sm:$0xf]
        %v384 = vld [vmem:[%s378 + $0x14] sm:$0xf]
        %v385 = vld [vmem:[%s378 + $0x18] sm:$0xf]
        %v386 = vld [vmem:[%s378 + $0x1c] sm:$0xf]
        %v387 = vld [vmem:[%s378 + $0x20] sm:$0xf]
        %v388 = vld [vmem:[%s378 + $0x24] sm:$0xf]
        %v389 = vld [vmem:[%s378 + $0x28] sm:$0xf]
        %v390 = vld [vmem:[%s378 + $0x2c] sm:$0xf]
        %v391 = vld [vmem:[%s378 + $0x30] sm:$0xf]
        %v392 = vld [vmem:[%s378 + $0x34] sm:$0xf]
        %v393 = vld [vmem:[%s378 + $0x38] sm:$0xf]
        %v394 = vld [vmem:[%s378 + $0x3c] sm:$0xf]
        %s395 = sadd.s32 %s368, 1
        %s396 = sld [smem:[#allocation3 + %s395]]
        %s397 = smul.u32 %s396, 2
        %s398 = smul.addr %s397, 4
        %s399 = scalar_lea.vmem [#allocation5], %s398
        %v400 = vld [vmem:[%s399] sm:$0xf]
        %v401 = vld [vmem:[%s399 + $0x4] sm:$0xf]
        %s402 = sld [smem:[#allocation4 + %s395]]
        %s403 = smul.u32 %s402, 16
        %s404 = smul.addr %s403, 4
        %s405 = scalar_lea.vmem [#allocation8], %s404
        %v406 = vld [vmem:[%s405] sm:$0xf]
        %v407 = vld [vmem:[%s405 + $0x4] sm:$0xf]
        %v408 = vld [vmem:[%s405 + $0x8] sm:$0xf]
        %v409 = vld [vmem:[%s405 + $0xc] sm:$0xf]
        %v410 = vld [vmem:[%s405 + $0x10] sm:$0xf]
        %v411 = vld [vmem:[%s405 + $0x14] sm:$0xf]
        %v412 = vld [vmem:[%s405 + $0x18] sm:$0xf]
        %v413 = vld [vmem:[%s405 + $0x1c] sm:$0xf]
        %v414 = vld [vmem:[%s405 + $0x20] sm:$0xf]
        %v415 = vld [vmem:[%s405 + $0x24] sm:$0xf]
        %v416 = vld [vmem:[%s405 + $0x28] sm:$0xf]
        %v417 = vld [vmem:[%s405 + $0x2c] sm:$0xf]
        %v418 = vld [vmem:[%s405 + $0x30] sm:$0xf]
        %v419 = vld [vmem:[%s405 + $0x34] sm:$0xf]
        %v420 = vld [vmem:[%s405 + $0x38] sm:$0xf]
        %v421 = vld [vmem:[%s405 + $0x3c] sm:$0xf]
        %v424 = vunpack.c.l.b16 %v400
        %v425 = vunpack.c.l.b16 %v401
        %v426 = vpack.c.b16 %v425, %v424
        %v444 = vunpack.c.l.b16 %v406
        %v445 = vunpack.c.l.b16 %v407
        %v446 = vunpack.c.l.b16 %v408
        %v447 = vunpack.c.l.b16 %v409
        %v448 = vunpack.c.l.b16 %v410
        %v449 = vunpack.c.l.b16 %v411
        %v450 = vunpack.c.l.b16 %v412
        %v451 = vunpack.c.l.b16 %v413
        %v452 = vunpack.c.l.b16 %v414
        %v453 = vunpack.c.l.b16 %v415
        %v454 = vunpack.c.l.b16 %v416
        %v455 = vunpack.c.l.b16 %v417
        %v456 = vunpack.c.l.b16 %v418
        %v457 = vunpack.c.l.b16 %v419
        %v458 = vunpack.c.l.b16 %v420
        %v459 = vunpack.c.l.b16 %v421
        %v460 = vpack.c.b16 %v445, %v444
        %v461 = vpack.c.b16 %v447, %v446
        %v462 = vpack.c.b16 %v449, %v448
        %v463 = vpack.c.b16 %v451, %v450
        %v464 = vpack.c.b16 %v453, %v452
        %v465 = vpack.c.b16 %v455, %v454
        %v466 = vpack.c.b16 %v457, %v456
        %v467 = vpack.c.b16 %v459, %v458
        %476 = vmatpush.bf16.msra.mxu0 %v467
        %477 = vmatpush.bf16.msra.mxu0 %v466
        %478 = vmatpush.bf16.msra.mxu0 %v465
        %479 = vmatpush.bf16.msra.mxu0 %v464
        %480 = vmatpush.bf16.msra.mxu0 %v463
        %481 = vmatpush.bf16.msra.mxu0 %v462
        %482 = vmatpush.bf16.msra.mxu0 %v461
        %483 = vmatpush.bf16.msra.mxu0 %v460
        %484 = vmatmul.bf16.gmra.mxu0 %v426
        %v485 = vpop.f32.mrf.mxu0
        %v486 = vadd.f32 0.0, %v485
        %v487 = vpop.f32.mrf.mxu0
        %v488 = vadd.f32 0.0, %v487
        %489 = vdwg.mxu0
        %v492 = vunpack.c.l.b16 %v373
        %v493 = vunpack.c.l.b16 %v374
        %v494 = vpack.c.b16 %v493, %v492
        %v512 = vunpack.c.l.b16 %v379
        %v513 = vunpack.c.l.b16 %v380
        %v514 = vunpack.c.l.b16 %v381
        %v515 = vunpack.c.l.b16 %v382
        %v516 = vunpack.c.l.b16 %v383
        %v517 = vunpack.c.l.b16 %v384
        %v518 = vunpack.c.l.b16 %v385
        %v519 = vunpack.c.l.b16 %v386
        %v520 = vunpack.c.l.b16 %v387
        %v521 = vunpack.c.l.b16 %v388
        %v522 = vunpack.c.l.b16 %v389
        %v523 = vunpack.c.l.b16 %v390
        %v524 = vunpack.c.l.b16 %v391
        %v525 = vunpack.c.l.b16 %v392
        %v526 = vunpack.c.l.b16 %v393
        %v527 = vunpack.c.l.b16 %v394
        %v528 = vpack.c.b16 %v513, %v512
        %v529 = vpack.c.b16 %v515, %v514
        %v530 = vpack.c.b16 %v517, %v516
        %v531 = vpack.c.b16 %v519, %v518
        %v532 = vpack.c.b16 %v521, %v520
        %v533 = vpack.c.b16 %v523, %v522
        %v534 = vpack.c.b16 %v525, %v524
        %v535 = vpack.c.b16 %v527, %v526
        %544 = vmatpush.bf16.msra.mxu0 %v535
        %545 = vmatpush.bf16.msra.mxu0 %v534
        %546 = vmatpush.bf16.msra.mxu0 %v533
        %547 = vmatpush.bf16.msra.mxu0 %v532
        %548 = vmatpush.bf16.msra.mxu0 %v531
        %549 = vmatpush.bf16.msra.mxu0 %v530
        %550 = vmatpush.bf16.msra.mxu0 %v529
        %551 = vmatpush.bf16.msra.mxu0 %v528
        %552 = vmatmul.bf16.gmra.mxu0 %v494
        %v553 = vpop.f32.mrf.mxu0
        %v554 = vadd.f32 %v486, %v553
        %v555 = vpop.f32.mrf.mxu0
        %v556 = vadd.f32 %v488, %v555
        %557 = vdwg.mxu0
        %v558 = vpack.c.bf16 %v554, %v554
        %v559 = vpack.c.bf16 %v556, %v556
        %560 = vst [vmem:[%s170 + $0x4] sm:$0xf] %v558
        %561 = vst [vmem:[%s170 + $0xc] sm:$0xf] %v559
        %s562 = sand.u32 %s83, 1
        %s563 = scalar_lea.sflag [#allocation7], %s562
        %s564 = sand.u32 %s83, 1
        %s565 = smul.addr %s564, 16
        %s566 = scalar_lea.vmem [#allocation10], %s565
        // Predicated region
        $region37: #{tpu_custom_call.1} parent=27 // pred_check
          %p567 = pneg %p93
        $region38: #{tpu_custom_call.1} parent=27 // pred_check_branch
          %569 = sbr.rel (%p567) target = $region40
        $region39: #{tpu_custom_call.1} parent=27 // pred_region
          %s570 = smul.u32 2, %s33
          %572 = vsyncadd %s563, 0
          %s573 = smul.addr %s570, 4
          %s574 = scalar_lea.hbm %s4, %s573
          %s575 = sshll.u32 %s566, 4
          %s576 = int_to_ptr.vmem [resolvable:$true] %s575
          %s577 = sshll.u32 %s574, 4
          %s578 = int_to_ptr.hbm [resolvable:$true] %s577
          %583 = dma.vmem_to_hbm [thread:$0]  %s576, 256, %s578, %s563, 128, 256, 8
        $region40: #{tpu_custom_call.1} parent=27 // pred_fallthru
          _
      $region28: #{tpu_custom_call.1} parent=5 // pred_fallthru
        _
      %p584 = scmp.le.s32.totalorder 2, %s28
      // Predicated region
      $region41: #{tpu_custom_call.1} parent=5 // pred_check
        %p585 = pneg %p584
      $region42: #{tpu_custom_call.1} parent=5 // pred_check_branch
        %587 = sbr.rel (%p585) target = $region44
      $region43: #{tpu_custom_call.1} parent=5 // pred_region
        %s588 = ssub.s32 %s28, 2
        // Predicated region
        $region45: #{tpu_custom_call.1} parent=43 // pred_check
          %p589 = pneg %p99
        $region46: #{tpu_custom_call.1} parent=43 // pred_check_branch
          %591 = sbr.rel (%p589) target = $region48
        $region47: #{tpu_custom_call.1} parent=43 // pred_region
          %s592 = sand.u32 %s84, 1
          %s593 = scalar_lea.sflag [#allocation7], %s592
          %s594 = sand.u32 %s84, 1
          %s595 = smul.addr %s594, 16
          %s596 = scalar_lea.vmem [#allocation10], %s595
          %598 = dma.done %s593, 256
        $region48: #{tpu_custom_call.1} parent=43 // pred_fallthru
          _
      $region44: #{tpu_custom_call.1} parent=5 // pred_fallthru
        _
    $region6: #{tpu_custom_call.1} parent=1 // loop_footer
      %s32 = sadd.s32 1, %s28
    $region7: #{tpu_custom_call.1} parent=1 // loop_footer_branch
      %27 = sbr.rel target = $region3
    $region8: #{tpu_custom_call.1} parent=1 // loop_exit
      _
    %599 = vsyncpa [#allocation6], 1
    %s600 = scalar_lea.sflag [#allocation6], 1
    %601 = vsyncpa %s600, 1
    %602 = vsyncpa [#allocation9], 1
    %603 = vsyncpa [#allocation7], 1
    %s604 = scalar_lea.sflag [#allocation7], 1
    %605 = vsyncpa %s604, 1

</llo_original>
